<compile_context>
chip_gen: v7x
topology: tpu7x:2x2x1
jax: 0.10.0
libtpu: 0.0.40
codegen_flags: <defaults>
</compile_context>

<pallas_src>
import functools

import jax
import jax.numpy as jnp
from jax.experimental import pallas as pl
from jax.experimental.pallas import tpu as pltpu

_LANE = 128      # lane tile (last dim)
_SUBLANE = 8     # sublane tile for f32 (second-to-last dim)


def _round_up(x, m):
    return (x + m - 1) // m * m


def _pad2d(a, rows, cols):
    r, c = a.shape
    return jnp.pad(a, ((0, rows - r), (0, cols - c)))


# ----------------------------------------------------------------------------
# Single-step kernel: fused [x|h] matmul, lane-dense padded outputs.
# ----------------------------------------------------------------------------
def _rnn_step_kernel(xh_ref, w_cat_ref, b_cat_ref, w_out_ref, b_out_ref,
                     out_ref, h_new_ref):
    # combined = [x, h] @ [W_in^T ; W_h^T] + (b_in + b_h)  -- one fused MXU matmul,
    # f32 accumulation.
    combined = jnp.dot(xh_ref[...], w_cat_ref[...],
                       preferred_element_type=jnp.float32) + b_cat_ref[...]
    # hidden' = tanh(combined)  (EUP transcendental, f32)
    h_new_ref[...] = jnp.tanh(combined).astype(h_new_ref.dtype)
    # output = combined @ W_out^T + b_out  (module uses pre-activation `combined`)
    out_ref[...] = (
        jnp.dot(combined.astype(w_out_ref.dtype), w_out_ref[...],
                preferred_element_type=jnp.float32) + b_out_ref[...]
    ).astype(out_ref.dtype)


def simple_rnn_forward(x, hidden, prepared):
    """One RNN-cell step. x: (B, I) f32, hidden: (B, H) f32 -> (out (B,O), h' (B,H))."""
    B = x.shape[0]
    I, H, O, I_p, H_p, O_p, K_p = prepared["dims"]
    cdt = prepared["compute_dtype"]
    B_p = _round_up(max(B, _SUBLANE), _SUBLANE)

    K = x.shape[1] + hidden.shape[1]
    xh = jnp.concatenate([x, hidden], axis=1)                      # (B, I+H)
    xh = jnp.pad(xh, ((0, B_p - B), (0, K_p - K))).astype(cdt)     # lane/sublane dense

    vmem = pl.BlockSpec(memory_space=pltpu.MemorySpace.VMEM)       # whole array, resident
    out_p, h_p = pl.pallas_call(
        _rnn_step_kernel,
        out_shape=(
            jax.ShapeDtypeStruct((B_p, O_p), jnp.float32),
            jax.ShapeDtypeStruct((B_p, H_p), jnp.float32),
        ),
        in_specs=[vmem] * 5,
        out_specs=(vmem, vmem),
    )(xh, prepared["w_cat"], prepared["b_cat"],
      prepared["w_out"], prepared["b_out"])

    return out_p[:B, :O], h_p[:B, :H]


# ----------------------------------------------------------------------------
# Sequence kernel: time loop inside one pallas_call, weights resident in VMEM,
# hidden state carried in a VMEM scratch across grid steps.
# ----------------------------------------------------------------------------
def _rnn_seq_kernel(x_ref, h0_ref, w_in_ref, w_h_ref, b_cat_ref,
                    w_out_ref, b_out_ref,
                    out_ref, h_last_ref, h_scratch):
    t = pl.program_id(0)

    @pl.when(t == 0)
    def _init():
        h_scratch[...] = h0_ref[...]

    combined = (
        jnp.dot(x_ref[0], w_in_ref[...], preferred_element_type=jnp.float32)
        + jnp.dot(h_scratch[...], w_h_ref[...], preferred_element_type=jnp.float32)
        + b_cat_ref[...]
    )
    h_new = jnp.tanh(combined)
    h_scratch[...] = h_new.astype(h_scratch.dtype)
    out_ref[0] = (
        jnp.dot(combined.astype(w_out_ref.dtype), w_out_ref[...],
                preferred_element_type=jnp.float32) + b_out_ref[...]
    ).astype(out_ref.dtype)

    @pl.when(t == pl.num_programs(0) - 1)
    def _final():
        h_last_ref[...] = h_new.astype(h_last_ref.dtype)


def simple_rnn_forward_sequence(x_seq, hidden, prepared):
    """Run the cell over x_seq: (T, B, I) with the recurrence inside one kernel.

    Returns (outputs (T, B, O), final hidden (B, H))."""
    T, B, _ = x_seq.shape
    I, H, O, I_p, H_p, O_p, K_p = prepared["dims"]
    cdt = prepared["compute_dtype"]
    B_p = _round_up(max(B, _SUBLANE), _SUBLANE)

    x_p = jnp.pad(x_seq, ((0, 0), (0, B_p - B), (0, I_p - I))).astype(cdt)
    h0_p = jnp.pad(hidden, ((0, B_p - B), (0, H_p - H))).astype(cdt)

    full = lambda shape: pl.BlockSpec(shape, lambda t: tuple(0 for _ in shape))

    out_p, h_last_p = pl.pallas_call(
        _rnn_seq_kernel,
        grid=(T,),
        out_shape=(
            jax.ShapeDtypeStruct((T, B_p, O_p), jnp.float32),
            jax.ShapeDtypeStruct((B_p, H_p), jnp.float32),
        ),
        in_specs=[
            pl.BlockSpec((1, B_p, I_p), lambda t: (t, 0, 0)),   # x_t streamed per step
            full((B_p, H_p)),                                   # h0 (read once at t==0)
            full((I_p, H_p)),                                   # W_in^T  (resident)
            full((H_p, H_p)),                                   # W_h^T   (resident)
            full((1, H_p)),                                     # b_in + b_h
            full((H_p, O_p)),                                   # W_out^T (resident)
            full((1, O_p)),                                     # b_out
        ],
        out_specs=(
            pl.BlockSpec((1, B_p, O_p), lambda t: (t, 0, 0)),   # per-step output
            pl.BlockSpec((B_p, H_p), lambda t: (0, 0)),         # final hidden (accumulator)
        ),
        scratch_shapes=[pltpu.VMEM((B_p, H_p), cdt)],           # carried hidden state
        compiler_params=pltpu.CompilerParams(
            dimension_semantics=("arbitrary",)),                # recurrence: sequential
    )(x_p, h0_p, prepared["w_in"], prepared["w_h"], prepared["b_cat"],
      prepared["w_out"], prepared["b_out"])

    return out_p[:, :B, :O], h_last_p[:B, :H]


# ----------------------------------------------------------------------------
# Parameter preparation / init / reference
# ----------------------------------------------------------------------------
def prepare_params(params, input_size, hidden_size, output_size,
                   compute_dtype=jnp.bfloat16):
    """Pad + fuse raw (already transposed) linear weights for the kernels.

    Weights cast to `compute_dtype` for the MXU; biases kept f32."""
    w_in, b_in, w_h, b_h, w_out, b_out = params
    I, H, O = input_size, hidden_size, output_size
    I_p = _round_up(I, _LANE)
    H_p = _round_up(H, _LANE)
    O_p = _round_up(O, _LANE)
    K = I + H
    K_p = _round_up(K, _LANE)

    # Fused gate weight [W_in^T ; W_h^T] aligned with the concatenated [x|h] input.
    w_cat = jnp.zeros((K_p, H_p), jnp.float32)
    w_cat = w_cat.at[:I, :H].set(w_in)
    w_cat = w_cat.at[I:K, :H].set(w_h)

    return dict(
        w_cat=w_cat.astype(compute_dtype),
        b_cat=_pad2d(b_in + b_h, 1, H_p),                       # f32, pre-summed
        w_in=_pad2d(w_in, I_p, H_p).astype(compute_dtype),
        w_h=_pad2d(w_h, H_p, H_p).astype(compute_dtype),
        w_out=_pad2d(w_out, H_p, O_p).astype(compute_dtype),
        b_out=_pad2d(b_out, 1, O_p),                            # f32
        dims=(I, H, O, I_p, H_p, O_p, K_p),
        compute_dtype=compute_dtype,
    )


def init_params(key, input_size, hidden_size, output_size):
    """nn.Linear-style U(-1/sqrt(fan_in), 1/sqrt(fan_in)); weights stored transposed."""
    ks = jax.random.split(key, 6)

    def lin(kw, kb, fan_in, fan_out):
        bound = 1.0 / jnp.sqrt(jnp.float32(fan_in))
        w = jax.random.uniform(kw, (fan_in, fan_out), jnp.float32, -bound, bound)
        b = jax.random.uniform(kb, (1, fan_out), jnp.float32, -bound, bound)
        return w, b

    w_in, b_in = lin(ks[0], ks[1], input_size, hidden_size)
    w_h, b_h = lin(ks[2], ks[3], hidden_size, hidden_size)
    w_out, b_out = lin(ks[4], ks[5], hidden_size, output_size)
    return (w_in, b_in, w_h, b_h, w_out, b_out)


def reference_forward(x, hidden, params):
    """Pure-f32 reference matching the PyTorch module's RNN forward."""
    w_in, b_in, w_h, b_h, w_out, b_out = params
    hp = jax.lax.Precision.HIGHEST
    combined = (jnp.dot(x, w_in, precision=hp) + b_in
                + jnp.dot(hidden, w_h, precision=hp) + b_h)
    output = jnp.dot(combined, w_out, precision=hp) + b_out
    return output, jnp.tanh(combined)


if __name__ == "__main__":
    batch, input_size, hidden_size, output_size, seq_len = 2, 16, 32, 8, 8

    key = jax.random.PRNGKey(0)
    k_x, k_h, k_p, k_seq = jax.random.split(key, 4)

    x = jax.random.normal(k_x, (batch, input_size), jnp.float32)
    hidden = jax.random.normal(k_h, (batch, hidden_size), jnp.float32)
    x_seq = jax.random.normal(k_seq, (seq_len, batch, input_size), jnp.float32)
    params = init_params(k_p, input_size, hidden_size, output_size)

    # f32-looped reference for the sequence
    h_ref = hidden
    ref_outs = []
    for t in range(seq_len):
        o_t, h_ref = reference_forward(x_seq[t], h_ref, params)
        ref_outs.append(o_t)
    ref_out_seq = jnp.stack(ref_outs)
    ref_out, ref_h = reference_forward(x, hidden, params)

    # --- exact-semantics check: f32 compute path, tight tolerance ---
    prep_f32 = prepare_params(params, input_size, hidden_size, output_size,
                              compute_dtype=jnp.float32)
    step_f32 = jax.jit(functools.partial(simple_rnn_forward, prepared=prep_f32))
    out, h_new = step_f32(x, hidden)
    jax.block_until_ready((out, h_new))
    assert jnp.allclose(out, ref_out, atol=1e-4, rtol=1e-4)
    assert jnp.allclose(h_new, ref_h, atol=1e-4, rtol=1e-4)

    seq_f32 = jax.jit(functools.partial(simple_rnn_forward_sequence, prepared=prep_f32))
    out_seq, h_last = seq_f32(x_seq, hidden)
    jax.block_until_ready((out_seq, h_last))
    assert jnp.allclose(out_seq, ref_out_seq, atol=1e-4, rtol=1e-4)
    assert jnp.allclose(h_last, jnp.tanh(
        x_seq[-1] @ params[0] + params[1] + 0), atol=1e9)  # placeholder-free: real check below
    assert jnp.allclose(h_last, h_ref, atol=1e-4, rtol=1e-4)

    # --- bf16 MXU inputs, f32 accumulation: looser (rounding) tolerance ---
    prep_bf16 = prepare_params(params, input_size, hidden_size, output_size,
                               compute_dtype=jnp.bfloat16)
    step_bf16 = jax.jit(functools.partial(simple_rnn_forward, prepared=prep_bf16))
    out_b, h_b = step_bf16(x, hidden)
    jax.block_until_ready((out_b, h_b))
    assert jnp.allclose(out_b, ref_out, atol=5e-2, rtol=5e-2)
    assert jnp.allclose(h_b, ref_h, atol=5e-2, rtol=5e-2)

    seq_bf16 = jax.jit(functools.partial(simple_rnn_forward_sequence, prepared=prep_bf16))
    out_seq_b, h_last_b = seq_bf16(x_seq, hidden)
    jax.block_until_ready((out_seq_b, h_last_b))
    assert jnp.allclose(out_seq_b, ref_out_seq, atol=1e-1, rtol=1e-1)
    assert jnp.allclose(h_last_b, h_ref, atol=1e-1, rtol=1e-1)

    print("KERNEL_OK")
</pallas_src>

<mosaic_0001>
module attributes {stable_mosaic.version = 11 : i64} {
  func.func @_rnn_step_kernel(%arg0: memref<8x128xf32, #tpu.memory_space<vmem>>, %arg1: memref<128x128xf32, #tpu.memory_space<vmem>>, %arg2: memref<1x128xf32, #tpu.memory_space<vmem>>, %arg3: memref<128x128xf32, #tpu.memory_space<vmem>>, %arg4: memref<1x128xf32, #tpu.memory_space<vmem>>, %arg5: memref<8x128xf32, #tpu.memory_space<vmem>>, %arg6: memref<8x128xf32, #tpu.memory_space<vmem>>) attributes {dimension_semantics = [], scalar_prefetch = 0 : i64, scratch_operands = 0 : i64, tpu.core_type = #tpu.core_type<tc>} {
    %c0 = arith.constant 0 : index
    %c0_0 = arith.constant 0 : index
    %0 = vector.load %arg0[%c0, %c0_0] : memref<8x128xf32, #tpu.memory_space<vmem>>, vector<8x128xf32>
    %c0_1 = arith.constant 0 : index
    %c0_2 = arith.constant 0 : index
    %1 = vector.load %arg1[%c0_1, %c0_2] : memref<128x128xf32, #tpu.memory_space<vmem>>, vector<128x128xf32>
    %cst = arith.constant dense<0.000000e+00> : vector<8x128xf32>
    %2 = tpu.matmul %0, %1, %cst {dimension_numbers = #tpu.dot_dimension_numbers<[1], [0], [0], [1], [0, 0, 1, 1], [], []>} : vector<8x128xf32>, vector<128x128xf32>, vector<8x128xf32> -> vector<8x128xf32>
    %c0_3 = arith.constant 0 : index
    %c0_4 = arith.constant 0 : index
    %3 = vector.load %arg2[%c0_3, %c0_4] : memref<1x128xf32, #tpu.memory_space<vmem>>, vector<1x128xf32>
    %4 = vector.broadcast %3 : vector<1x128xf32> to vector<8x128xf32>
    %5 = arith.addf %2, %4 : vector<8x128xf32>
    %6 = math.tanh %5 : vector<8x128xf32>
    %c0_5 = arith.constant 0 : index
    %c0_6 = arith.constant 0 : index
    %7 = vector.load %arg6[%c0_5, %c0_6] : memref<8x128xf32, #tpu.memory_space<vmem>>, vector<8x128xf32>
    tpu.vector_store %arg6[%c0_5, %c0_6], %6 {strides = array<i32>} : memref<8x128xf32, #tpu.memory_space<vmem>>, vector<8x128xf32>,
    %c0_7 = arith.constant 0 : index
    %c0_8 = arith.constant 0 : index
    %8 = vector.load %arg3[%c0_7, %c0_8] : memref<128x128xf32, #tpu.memory_space<vmem>>, vector<128x128xf32>
    %cst_9 = arith.constant dense<0.000000e+00> : vector<8x128xf32>
    %9 = tpu.matmul %5, %8, %cst_9 {dimension_numbers = #tpu.dot_dimension_numbers<[1], [0], [0], [1], [0, 0, 1, 1], [], []>} : vector<8x128xf32>, vector<128x128xf32>, vector<8x128xf32> -> vector<8x128xf32>
    %c0_10 = arith.constant 0 : index
    %c0_11 = arith.constant 0 : index
    %10 = vector.load %arg4[%c0_10, %c0_11] : memref<1x128xf32, #tpu.memory_space<vmem>>, vector<1x128xf32>
    %11 = vector.broadcast %10 : vector<1x128xf32> to vector<8x128xf32>
    %12 = arith.addf %9, %11 : vector<8x128xf32>
    %c0_12 = arith.constant 0 : index
    %c0_13 = arith.constant 0 : index
    %13 = vector.load %arg5[%c0_12, %c0_13] : memref<8x128xf32, #tpu.memory_space<vmem>>, vector<8x128xf32>
    tpu.vector_store %arg5[%c0_12, %c0_13], %12 {strides = array<i32>} : memref<8x128xf32, #tpu.memory_space<vmem>>, vector<8x128xf32>,
    return
  }
}

</mosaic_0001>

<llo_original>
// kernel: simple_rnn_forward.1
$region0: #{simple_rnn_forward.1}
  #allocation0 [shape = 'u32[]', space=smem, size = 0x4, offset = 0x4, fixed_abs, tag = 'smem constant byte address 0x4 - core index']
  #allocation1 [shape = 'u32[144,128]{1,0:T(1,128)}', space=vmem, size = 0x12000, scoped, tag = 'internal scratch']
  %s0 = inlined_call_operand.vmem [shape: f32[8,128], index: 0, kind: input, shape index: {}]
  %s1 = inlined_call_operand.hbm [shape: f32[128,128], index: 1, kind: input, shape index: {}]
  %s2 = inlined_call_operand.vmem [shape: f32[1,128], index: 2, kind: input, shape index: {}]
  %s3 = inlined_call_operand.hbm [shape: f32[128,128], index: 3, kind: input, shape index: {}]
  %s4 = inlined_call_operand.vmem [shape: f32[1,128], index: 4, kind: input, shape index: {}]
  %s5 = inlined_call_operand.vmem [shape: f32[8,128], index: 5, kind: output, shape index: {0}]
  %s6 = inlined_call_operand.vmem [shape: f32[8,128], index: 6, kind: output, shape index: {1}]
  %7 = xla_tuple %s5, %s6
  %s8 = sld [smem:[#allocation0]]
  $region46: #{simple_rnn_forward.1} parent=0
    _
  %s10 = ssub.s32 1, %s8
  %s11 = scalar_select 0, %s10, %s8
  $region1: #{simple_rnn_forward.1} parent=0
    #allocation2 [shape = 'u8[65536]{0}', space=vmem, size = 0x10000, scoped, tag = 'input window, operand 1, single buffered']
    #allocation3 [shape = 's32[1]{0}', space=sflag, size = 0x4, scoped, tag = 'scoped memory for simple_rnn_forward.1']
    #allocation4 [shape = 'u8[65536]{0}', space=vmem, size = 0x10000, scoped, tag = 'input window, operand 3, single buffered']
    #allocation5 [shape = 's32[1]{0}', space=sflag, size = 0x4, scoped, tag = 'scoped memory for simple_rnn_forward.1']
    %12 = vsyncpa [#allocation3], 0
    %13 = vsyncpa [#allocation5], 0
    // Predicated region
    $region2: #{simple_rnn_forward.1} parent=1 // pred_check
      _
    $region3: #{simple_rnn_forward.1} parent=1 // pred_check_branch
      %15 = sbr.rel (0) target = $region5
    $region4: #{simple_rnn_forward.1} parent=1 // pred_region
      _
    $region5: #{simple_rnn_forward.1} parent=1 // pred_fallthru
      _
    // Predicated region
    $region6: #{simple_rnn_forward.1} parent=1 // pred_check
      _
    $region7: #{simple_rnn_forward.1} parent=1 // pred_check_branch
      %17 = sbr.rel (0) target = $region9
    $region8: #{simple_rnn_forward.1} parent=1 // pred_region
      %s19 = ssub.s32 2048, 2048
      %20 = vsyncadd [#allocation3], %s19
      %s21 = sshll.u32 [#allocation2], 4
      %s22 = int_to_ptr.vmem [resolvable:$true] %s21
      %27 = dma.hbm_to_vmem [thread:$0]  %s1, 2048, %s22, [#allocation3], 128, 128, 8
    $region9: #{simple_rnn_forward.1} parent=1 // pred_fallthru
      _
    // Predicated region
    $region10: #{simple_rnn_forward.1} parent=1 // pred_check
      _
    $region11: #{simple_rnn_forward.1} parent=1 // pred_check_branch
      %29 = sbr.rel (0) target = $region13
    $region12: #{simple_rnn_forward.1} parent=1 // pred_region
      _
    $region13: #{simple_rnn_forward.1} parent=1 // pred_fallthru
      _
    // Predicated region
    $region14: #{simple_rnn_forward.1} parent=1 // pred_check
      _
    $region15: #{simple_rnn_forward.1} parent=1 // pred_check_branch
      %31 = sbr.rel (0) target = $region17
    $region16: #{simple_rnn_forward.1} parent=1 // pred_region
      %s33 = ssub.s32 2048, 2048
      %34 = vsyncadd [#allocation5], %s33
      %s35 = sshll.u32 [#allocation4], 4
      %s36 = int_to_ptr.vmem [resolvable:$true] %s35
      %41 = dma.hbm_to_vmem [thread:$0]  %s3, 2048, %s36, [#allocation5], 128, 128, 8
    $region17: #{simple_rnn_forward.1} parent=1 // pred_fallthru
      _
    // Predicated region
    $region18: #{simple_rnn_forward.1} parent=1 // pred_check
      _
    $region19: #{simple_rnn_forward.1} parent=1 // pred_check_branch
      %43 = sbr.rel (0) target = $region21
    $region20: #{simple_rnn_forward.1} parent=1 // pred_region
      _
    $region21: #{simple_rnn_forward.1} parent=1 // pred_fallthru
      _
    // Predicated region
    $region22: #{simple_rnn_forward.1} parent=1 // pred_check
      _
    $region23: #{simple_rnn_forward.1} parent=1 // pred_check_branch
      %45 = sbr.rel (0) target = $region25
    $region24: #{simple_rnn_forward.1} parent=1 // pred_region
      %46 = dma.done [#allocation3], 2048
    $region25: #{simple_rnn_forward.1} parent=1 // pred_fallthru
      _
    // Predicated region
    $region26: #{simple_rnn_forward.1} parent=1 // pred_check
      _
    $region27: #{simple_rnn_forward.1} parent=1 // pred_check_branch
      %48 = sbr.rel (0) target = $region29
    $region28: #{simple_rnn_forward.1} parent=1 // pred_region
      %49 = dma.done [#allocation5], 2048
    $region29: #{simple_rnn_forward.1} parent=1 // pred_fallthru
      _
    %v50 = vld [vmem:[%s0] sm:$0xff]
    %v51 = vld [vmem:[#allocation2] sm:$0xff]
    %v52 = vld [vmem:[#allocation2 + $0x8] sm:$0xff]
    %v53 = vld [vmem:[#allocation2 + $0x10] sm:$0xff]
    %v54 = vld [vmem:[#allocation2 + $0x18] sm:$0xff]
    %v55 = vld [vmem:[#allocation2 + $0x20] sm:$0xff]
    %v56 = vld [vmem:[#allocation2 + $0x28] sm:$0xff]
    %v57 = vld [vmem:[#allocation2 + $0x30] sm:$0xff]
    %v58 = vld [vmem:[#allocation2 + $0x38] sm:$0xff]
    %v59 = vld [vmem:[#allocation2 + $0x40] sm:$0xff]
    %v60 = vld [vmem:[#allocation2 + $0x48] sm:$0xff]
    %v61 = vld [vmem:[#allocation2 + $0x50] sm:$0xff]
    %v62 = vld [vmem:[#allocation2 + $0x58] sm:$0xff]
    %v63 = vld [vmem:[#allocation2 + $0x60] sm:$0xff]
    %v64 = vld [vmem:[#allocation2 + $0x68] sm:$0xff]
    %v65 = vld [vmem:[#allocation2 + $0x70] sm:$0xff]
    %v66 = vld [vmem:[#allocation2 + $0x78] sm:$0xff]
    %v67 = vld [vmem:[%s2] sm:$0x1]
    %v69 = vlaneseq
    %v70 = vshrl.u32 %v69, 7
    %v71 = vsub.s32 0, %v70
    %v72 = vrot.slane %v67, %v71
    %74 = vmatprep.subr.mxu0 0.0
    %75 = vmatpush1.msra.mxu0 %v51
    %76 = vmatprep.subr.mxu0 0.0
    %77 = vmatpush1.msra.mxu0 %v52
    %78 = vmatprep.subr.mxu0 0.0
    %79 = vmatpush1.msra.mxu0 %v53
    %80 = vmatprep.subr.mxu0 0.0
    %81 = vmatpush1.msra.mxu0 %v54
    %82 = vmatprep.subr.mxu0 0.0
    %83 = vmatpush1.msra.mxu0 %v55
    %84 = vmatprep.subr.mxu0 0.0
    %85 = vmatpush1.msra.mxu0 %v56
    %86 = vmatprep.subr.mxu0 0.0
    %87 = vmatpush1.msra.mxu0 %v57
    %88 = vmatprep.subr.mxu0 0.0
    %89 = vmatpush1.msra.mxu0 %v58
    %90 = vmatprep.subr.mxu0 0.0
    %91 = vmatpush1.msra.mxu0 %v59
    %92 = vmatprep.subr.mxu0 0.0
    %93 = vmatpush1.msra.mxu0 %v60
    %94 = vmatprep.subr.mxu0 0.0
    %95 = vmatpush1.msra.mxu0 %v61
    %96 = vmatprep.subr.mxu0 0.0
    %97 = vmatpush1.msra.mxu0 %v62
    %98 = vmatprep.subr.mxu0 0.0
    %99 = vmatpush1.msra.mxu0 %v63
    %100 = vmatprep.subr.mxu0 0.0
    %101 = vmatpush1.msra.mxu0 %v64
    %102 = vmatprep.subr.mxu0 0.0
    %103 = vmatpush1.msra.mxu0 %v65
    %104 = vmatprep.subr.mxu0 0.0
    %105 = vmatpush1.msra.mxu0 %v66
    %106 = vmatprep.subr.mxu0 0.0
    %107 = vmatpush1.msra.mxu0 0.0
    %108 = vmatprep.subr.mxu0 0.0
    %109 = vmatpush1.msra.mxu0 0.0
    %110 = vmatprep.subr.mxu0 0.0
    %111 = vmatpush1.msra.mxu0 0.0
    %112 = vmatprep.subr.mxu0 0.0
    %113 = vmatpush1.msra.mxu0 0.0
    %114 = vmatprep.subr.mxu0 0.0
    %115 = vmatpush1.msra.mxu0 0.0
    %116 = vmatprep.subr.mxu0 0.0
    %117 = vmatpush1.msra.mxu0 0.0
    %118 = vmatprep.subr.mxu0 0.0
    %119 = vmatpush1.msra.mxu0 0.0
    %120 = vmatprep.subr.mxu0 0.0
    %121 = vmatpush1.msra.mxu0 0.0
    %122 = vmatprep.subr.mxu0 0.0
    %123 = vmatpush1.msra.mxu0 0.0
    %124 = vmatprep.subr.mxu0 0.0
    %125 = vmatpush1.msra.mxu0 0.0
    %126 = vmatprep.subr.mxu0 0.0
    %127 = vmatpush1.msra.mxu0 0.0
    %128 = vmatprep.subr.mxu0 0.0
    %129 = vmatpush1.msra.mxu0 0.0
    %130 = vmatprep.subr.mxu0 0.0
    %131 = vmatpush1.msra.mxu0 0.0
    %132 = vmatprep.subr.mxu0 0.0
    %133 = vmatpush1.msra.mxu0 0.0
    %134 = vmatprep.subr.mxu0 0.0
    %135 = vmatpush1.msra.mxu0 0.0
    %136 = vmatprep.subr.mxu0 0.0
    %137 = vmatpush1.msra.mxu0 0.0
    %138 = vmatprep.mubr.f32.mxu0 0.0
    %139 = vmatmul.mubr.f32.gmra.mrb[0].mxu0 %v50
    %v140 = vpop.f32.mrb[0].mxu0
    %v141 = vadd.f32 %v72, %v140
    %v142 = vpop.f32.mrb[0].mxu0
    %143 = vdwg.mxu0
    %v144 = vtanh.pop %v141
    %145 = vst [vmem:[%s6] sm:$0xff] %v144
    %v146 = vld [vmem:[#allocation4] sm:$0xff]
    %v147 = vld [vmem:[#allocation4 + $0x8] sm:$0xff]
    %v148 = vld [vmem:[#allocation4 + $0x10] sm:$0xff]
    %v149 = vld [vmem:[#allocation4 + $0x18] sm:$0xff]
    %v150 = vld [vmem:[#allocation4 + $0x20] sm:$0xff]
    %v151 = vld [vmem:[#allocation4 + $0x28] sm:$0xff]
    %v152 = vld [vmem:[#allocation4 + $0x30] sm:$0xff]
    %v153 = vld [vmem:[#allocation4 + $0x38] sm:$0xff]
    %v154 = vld [vmem:[#allocation4 + $0x40] sm:$0xff]
    %v155 = vld [vmem:[#allocation4 + $0x48] sm:$0xff]
    %v156 = vld [vmem:[#allocation4 + $0x50] sm:$0xff]
    %v157 = vld [vmem:[#allocation4 + $0x58] sm:$0xff]
    %v158 = vld [vmem:[#allocation4 + $0x60] sm:$0xff]
    %v159 = vld [vmem:[#allocation4 + $0x68] sm:$0xff]
    %v160 = vld [vmem:[#allocation4 + $0x70] sm:$0xff]
    %v161 = vld [vmem:[#allocation4 + $0x78] sm:$0xff]
    %v162 = vld [vmem:[%s4] sm:$0x1]
    %v164 = vlaneseq
    %v165 = vshrl.u32 %v164, 7
    %v166 = vsub.s32 0, %v165
    %v167 = vrot.slane %v162, %v166
    %169 = vmatprep.subr.mxu0 0.0
    %170 = vmatpush1.msra.mxu0 %v146
    %171 = vmatprep.subr.mxu0 0.0
    %172 = vmatpush1.msra.mxu0 %v147
    %173 = vmatprep.subr.mxu0 0.0
    %174 = vmatpush1.msra.mxu0 %v148
    %175 = vmatprep.subr.mxu0 0.0
    %176 = vmatpush1.msra.mxu0 %v149
    %177 = vmatprep.subr.mxu0 0.0
    %178 = vmatpush1.msra.mxu0 %v150
    %179 = vmatprep.subr.mxu0 0.0
    %180 = vmatpush1.msra.mxu0 %v151
    %181 = vmatprep.subr.mxu0 0.0
    %182 = vmatpush1.msra.mxu0 %v152
    %183 = vmatprep.subr.mxu0 0.0
    %184 = vmatpush1.msra.mxu0 %v153
    %185 = vmatprep.subr.mxu0 0.0
    %186 = vmatpush1.msra.mxu0 %v154
    %187 = vmatprep.subr.mxu0 0.0
    %188 = vmatpush1.msra.mxu0 %v155
    %189 = vmatprep.subr.mxu0 0.0
    %190 = vmatpush1.msra.mxu0 %v156
    %191 = vmatprep.subr.mxu0 0.0
    %192 = vmatpush1.msra.mxu0 %v157
    %193 = vmatprep.subr.mxu0 0.0
    %194 = vmatpush1.msra.mxu0 %v158
    %195 = vmatprep.subr.mxu0 0.0
    %196 = vmatpush1.msra.mxu0 %v159
    %197 = vmatprep.subr.mxu0 0.0
    %198 = vmatpush1.msra.mxu0 %v160
    %199 = vmatprep.subr.mxu0 0.0
    %200 = vmatpush1.msra.mxu0 %v161
    %201 = vmatprep.subr.mxu0 0.0
    %202 = vmatpush1.msra.mxu0 0.0
    %203 = vmatprep.subr.mxu0 0.0
    %204 = vmatpush1.msra.mxu0 0.0
    %205 = vmatprep.subr.mxu0 0.0
    %206 = vmatpush1.msra.mxu0 0.0
    %207 = vmatprep.subr.mxu0 0.0
    %208 = vmatpush1.msra.mxu0 0.0
    %209 = vmatprep.subr.mxu0 0.0
    %210 = vmatpush1.msra.mxu0 0.0
    %211 = vmatprep.subr.mxu0 0.0
    %212 = vmatpush1.msra.mxu0 0.0
    %213 = vmatprep.subr.mxu0 0.0
    %214 = vmatpush1.msra.mxu0 0.0
    %215 = vmatprep.subr.mxu0 0.0
    %216 = vmatpush1.msra.mxu0 0.0
    %217 = vmatprep.subr.mxu0 0.0
    %218 = vmatpush1.msra.mxu0 0.0
    %219 = vmatprep.subr.mxu0 0.0
    %220 = vmatpush1.msra.mxu0 0.0
    %221 = vmatprep.subr.mxu0 0.0
    %222 = vmatpush1.msra.mxu0 0.0
    %223 = vmatprep.subr.mxu0 0.0
    %224 = vmatpush1.msra.mxu0 0.0
    %225 = vmatprep.subr.mxu0 0.0
    %226 = vmatpush1.msra.mxu0 0.0
    %227 = vmatprep.subr.mxu0 0.0
    %228 = vmatpush1.msra.mxu0 0.0
    %229 = vmatprep.subr.mxu0 0.0
    %230 = vmatpush1.msra.mxu0 0.0
    %231 = vmatprep.subr.mxu0 0.0
    %232 = vmatpush1.msra.mxu0 0.0
    %233 = vmatprep.mubr.f32.mxu0 0.0
    %234 = vmatmul.mubr.f32.gmra.mrb[0].mxu0 %v141
    %v235 = vpop.f32.mrb[0].mxu0
    %v236 = vadd.f32 %v167, %v235
    %v237 = vpop.f32.mrb[0].mxu0
    %238 = vdwg.mxu0
    %239 = vst [vmem:[%s5] sm:$0xff] %v236
    // Predicated region
    $region30: #{simple_rnn_forward.1} parent=1 // pred_check
      _
    $region31: #{simple_rnn_forward.1} parent=1 // pred_check_branch
      %241 = sbr.rel (0) target = $region33
    $region32: #{simple_rnn_forward.1} parent=1 // pred_region
      _
    $region33: #{simple_rnn_forward.1} parent=1 // pred_fallthru
      _
    // Predicated region
    $region34: #{simple_rnn_forward.1} parent=1 // pred_check
      _
    $region35: #{simple_rnn_forward.1} parent=1 // pred_check_branch
      %243 = sbr.rel (0) target = $region37
    $region36: #{simple_rnn_forward.1} parent=1 // pred_region
      _
    $region37: #{simple_rnn_forward.1} parent=1 // pred_fallthru
      _
    // Predicated region
    $region38: #{simple_rnn_forward.1} parent=1 // pred_check
      _
    $region39: #{simple_rnn_forward.1} parent=1 // pred_check_branch
      %245 = sbr.rel (0) target = $region41
    $region40: #{simple_rnn_forward.1} parent=1 // pred_region
      _
    $region41: #{simple_rnn_forward.1} parent=1 // pred_fallthru
      _
    // Predicated region
    $region42: #{simple_rnn_forward.1} parent=1 // pred_check
      _
    $region43: #{simple_rnn_forward.1} parent=1 // pred_check_branch
      %247 = sbr.rel (0) target = $region45
    $region44: #{simple_rnn_forward.1} parent=1 // pred_region
      _
    $region45: #{simple_rnn_forward.1} parent=1 // pred_fallthru
      _
    %248 = vsyncpa [#allocation3], 1
    %249 = vsyncpa [#allocation5], 1

</llo_original>
